<compile_context>
chip_gen: v6e
topology: v6e:2x2x1
jax: 0.10.0
libtpu: 0.0.40
codegen_flags: <defaults>
</compile_context>

<pallas_src>
import functools

import jax
import jax.numpy as jnp
from jax import lax
from jax.experimental import pallas as pl
from jax.experimental.pallas import tpu as pltpu

EPS = 1e-5          # torch.nn.InstanceNorm2d default eps
NEG_SLOPE = 0.2     # LeakyReLU(0.2)
K = 4               # Conv2d kernel size


def unet_down_kernel(xcol_ref, w_ref, o_ref, *, normalize):
    """One image per grid step.

    xcol_ref : (1, 16*Cin, HW)  bf16  lane-dense im2col tap slabs,
               k index = (kh*4 + kw)*Cin + ci -> x_pad[ci, 2a+kh, 2b+kw]
    w_ref    : (Cout, 16*Cin)   bf16  fused conv weight, same k ordering
    o_ref    : (1, Cout, HW)    f32   conv (+ InstanceNorm) + LeakyReLU
    """
    # Single fused MXU matmul, K = 16*Cin, f32 accumulation; weight ref is
    # consumed directly at the matmul site (no long-lived whole-weight value).
    acc = jnp.dot(w_ref[...], xcol_ref[0],
                  preferred_element_type=jnp.float32)          # (Cout, HW) f32

    if normalize:
        # InstanceNorm2d (affine=False, biased variance) per channel over the
        # spatial (lane) axis.  Two-pass variance: `centered` is reused below,
        # so this costs no extra full pass and avoids E[x^2]-E[x]^2
        # cancellation.
        mean = jnp.mean(acc, axis=1, keepdims=True)
        centered = acc - mean
        var = jnp.mean(centered * centered, axis=1, keepdims=True)
        y = centered * lax.rsqrt(var + EPS)
    else:
        y = acc

    # LeakyReLU(0.2)
    y = jnp.where(y >= 0, y, NEG_SLOPE * y)

    o_ref[0] = y.astype(o_ref.dtype)


def _im2col_stride2(x, Hout, Wout):
    """(N, Cin, H, W) -> (N, 16*Cin, Hout*Wout) tap-major, lane-dense slabs.

    out[n, (kh*4 + kw)*Cin + ci, a*Wout + b] = x_pad[n, ci, 2a + kh, 2b + kw]
    """
    N, Cin, _, _ = x.shape
    xp = jnp.pad(x, ((0, 0), (0, 0), (1, 1), (1, 1)))
    slabs = []
    for kh in range(K):
        for kw in range(K):
            sl = lax.slice(
                xp,
                (0, 0, kh, kw),
                (N, Cin, kh + 2 * (Hout - 1) + 1, kw + 2 * (Wout - 1) + 1),
                (1, 1, 2, 2))                                   # (N,Cin,Hout,Wout)
            slabs.append(sl)
    xcol = jnp.stack(slabs, axis=1)                             # (N,16,Cin,Hout,Wout)
    return xcol.reshape(N, K * K * Cin, Hout * Wout)


def unet_down_forward(x_nchw, weight_oikk, *, normalize=True,
                      compute_dtype=jnp.bfloat16):
    """UNetDown forward (dropout=0.0).

    x_nchw      : (N, Cin, H, W)      float32, H and W even
    weight_oikk : (Cout, Cin, 4, 4)   Conv2d weight (PyTorch OIHW layout)
    returns     : (N, Cout, H//2, W//2) float32
    """
    N, Cin, H, W = x_nchw.shape
    Cout = weight_oikk.shape[0]
    assert H % 2 == 0 and W % 2 == 0, "stride-2 conv with pad=1 expects even H, W"
    Hout, Wout = H // 2, W // 2
    HW = Hout * Wout
    Kc = K * K * Cin                                            # 16*Cin

    # bf16 activations/weight feeding the MXU; accumulation stays f32 in-kernel.
    xcol = _im2col_stride2(x_nchw.astype(compute_dtype), Hout, Wout)
    # (co, ci, kh, kw) -> (co, kh, kw, ci) -> (Cout, 16*Cin), matching xcol's k.
    w_fused = jnp.transpose(weight_oikk.astype(compute_dtype),
                            (0, 2, 3, 1)).reshape(Cout, Kc)

    # NOTE: HW % 128 != 0 still works (block == full array dim) but stores go
    # lane-sparse; for deep layers (HW < 128) prefer a (HW, Cout) layout.
    xcol_bytes = Kc * HW * xcol.dtype.itemsize
    w_bytes = Cout * Kc * w_fused.dtype.itemsize
    out_bytes = Cout * HW * 4
    # double-buffered in/out blocks + headroom; cap below v7x's 64 MiB VMEM.
    vmem_limit_bytes = int(min(max(4 * (xcol_bytes + w_bytes + out_bytes)
                                   + (1 << 20), 16 << 20), 48 << 20))

    out_flat = pl.pallas_call(
        functools.partial(unet_down_kernel, normalize=normalize),
        out_shape=jax.ShapeDtypeStruct((N, Cout, HW), jnp.float32),
        grid_spec=pltpu.PrefetchScalarGridSpec(
            num_scalar_prefetch=0,
            grid=(N,),                                          # one image / step
            in_specs=[
                pl.BlockSpec((1, Kc, HW), lambda n: (n, 0, 0)),
                pl.BlockSpec((Cout, Kc), lambda n: (0, 0)),     # grid-invariant
            ],
            out_specs=pl.BlockSpec((1, Cout, HW), lambda n: (n, 0, 0)),
        ),
        compiler_params=pltpu.CompilerParams(
            dimension_semantics=("parallel",),                  # megacore on v7x
            vmem_limit_bytes=vmem_limit_bytes),
    )(xcol, w_fused)

    # (N, Cout, Hout*Wout) -> NCHW (free reshape, row-major spatial order).
    return out_flat.reshape(N, Cout, Hout, Wout)


def unet_down_reference(x_nchw, weight_oikk, *, normalize=True,
                        compute_dtype=jnp.bfloat16):
    """Pure-JAX reference mirroring PyTorch semantics (same compute dtype as
    the kernel: bf16 conv inputs, f32 accumulation)."""
    y = lax.conv_general_dilated(
        x_nchw.astype(compute_dtype), weight_oikk.astype(compute_dtype),
        window_strides=(2, 2), padding=[(1, 1), (1, 1)],
        dimension_numbers=('NCHW', 'OIHW', 'NCHW'),
        preferred_element_type=jnp.float32)
    if normalize:
        mean = jnp.mean(y, axis=(2, 3), keepdims=True)
        var = jnp.mean((y - mean) ** 2, axis=(2, 3), keepdims=True)
        y = (y - mean) * lax.rsqrt(var + EPS)
    return jnp.where(y >= 0, y, NEG_SLOPE * y)


if __name__ == "__main__":
    # Small shapes consistent with the module: in_size=4, out_size=8.
    # 32x32 input -> 16x16 output so the in-kernel lane axis (Hout*Wout = 256)
    # is a multiple of 128 (lane-dense compute, loads and stores).
    N, Cin, Hin, Win = 2, 4, 32, 32
    Cout = 8

    key = jax.random.PRNGKey(0)
    kx, kw = jax.random.split(key)
    x = jax.random.normal(kx, (N, Cin, Hin, Win), dtype=jnp.float32)
    # Conv2d weight shape: (out_size, in_size, 4, 4), no bias.
    weight = 0.1 * jax.random.normal(kw, (Cout, Cin, K, K), dtype=jnp.float32)

    out = unet_down_forward(x, weight)
    out = jax.block_until_ready(out)

    ref = unet_down_reference(x, weight)
    assert out.shape == (N, Cout, Hin // 2, Win // 2)
    max_diff = float(jnp.max(jnp.abs(out - ref)))
    assert jnp.allclose(out, ref, rtol=2e-3, atol=2e-3), (
        "max abs diff = %e" % max_diff)

    print("KERNEL_OK")
</pallas_src>

<mosaic_0001>
module attributes {stable_mosaic.version = 11 : i64} {
  func.func @unet_down_kernel(%arg0: i32, %arg1: memref<1x64x256xbf16, #tpu.memory_space<vmem>>, %arg2: memref<8x64xbf16, #tpu.memory_space<vmem>>, %arg3: memref<1x8x256xf32, #tpu.memory_space<vmem>>) attributes {dimension_semantics = [#tpu.dimension_semantics<parallel>], iteration_bounds = array<i64: 2>, scalar_prefetch = 0 : i64, scratch_operands = 0 : i64, tpu.core_type = #tpu.core_type<tc>, window_params = [{transform_indices = @transform_0, window_bounds = array<i64: 1, 64, 256>}, {pipeline_mode = #tpu.pipeline_mode<synchronous>, transform_indices = @transform_1, window_bounds = array<i64: 8, 64>}, {transform_indices = @transform_2, window_bounds = array<i64: 1, 8, 256>}]} {
    %c0 = arith.constant 0 : index
    %c0_0 = arith.constant 0 : index
    %0 = vector.load %arg2[%c0, %c0_0] : memref<8x64xbf16, #tpu.memory_space<vmem>>, vector<8x64xbf16>
    %c0_1 = arith.constant 0 : index
    %c0_2 = arith.constant 0 : index
    %c0_3 = arith.constant 0 : index
    %1 = vector.load %arg1[%c0_1, %c0_2, %c0_3] : memref<1x64x256xbf16, #tpu.memory_space<vmem>>, vector<1x64x256xbf16>
    %2 = vector.shape_cast %1 : vector<1x64x256xbf16> to vector<64x256xbf16>
    %cst = arith.constant dense<0.000000e+00> : vector<8x256xf32>
    %3 = tpu.matmul %0, %2, %cst {dimension_numbers = #tpu.dot_dimension_numbers<[1], [0], [0], [1], [0, 0, 1, 1], [], []>} : vector<8x64xbf16>, vector<64x256xbf16>, vector<8x256xf32> -> vector<8x256xf32>
    %cst_4 = arith.constant dense<0.000000e+00> : vector<8xf32>
    %4 = vector.multi_reduction <add>, %3, %cst_4 [1] : vector<8x256xf32> to vector<8xf32>
    %5 = vector.shape_cast %4 : vector<8xf32> to vector<8x1xf32>
    %cst_5 = arith.constant 2.560000e+02 : f32
    %6 = vector.broadcast %cst_5 : f32 to vector<8x1xf32>
    %7 = arith.divf %5, %6 : vector<8x1xf32>
    %8 = vector.broadcast %7 : vector<8x1xf32> to vector<8x256xf32>
    %9 = arith.subf %3, %8 : vector<8x256xf32>
    %10 = arith.mulf %9, %9 : vector<8x256xf32>
    %cst_6 = arith.constant dense<0.000000e+00> : vector<8xf32>
    %11 = vector.multi_reduction <add>, %10, %cst_6 [1] : vector<8x256xf32> to vector<8xf32>
    %12 = vector.shape_cast %11 : vector<8xf32> to vector<8x1xf32>
    %cst_7 = arith.constant 2.560000e+02 : f32
    %13 = vector.broadcast %cst_7 : f32 to vector<8x1xf32>
    %14 = arith.divf %12, %13 : vector<8x1xf32>
    %cst_8 = arith.constant 9.99999974E-6 : f32
    %15 = vector.broadcast %cst_8 : f32 to vector<8x1xf32>
    %16 = arith.addf %14, %15 : vector<8x1xf32>
    %17 = math.rsqrt %16 : vector<8x1xf32>
    %18 = vector.broadcast %17 : vector<8x1xf32> to vector<8x256xf32>
    %19 = arith.mulf %9, %18 : vector<8x256xf32>
    %cst_9 = arith.constant 0.000000e+00 : f32
    %20 = vector.broadcast %cst_9 : f32 to vector<8x256xf32>
    %21 = arith.cmpf oge, %19, %20 : vector<8x256xf32>
    %cst_10 = arith.constant 2.000000e-01 : f32
    %22 = vector.broadcast %cst_10 : f32 to vector<8x256xf32>
    %23 = arith.mulf %22, %19 : vector<8x256xf32>
    %24 = arith.select %21, %19, %23 : vector<8x256xi1>, vector<8x256xf32>
    %c0_11 = arith.constant 0 : index
    %c0_12 = arith.constant 0 : index
    %c0_13 = arith.constant 0 : index
    %25 = vector.load %arg3[%c0_11, %c0_12, %c0_13] : memref<1x8x256xf32, #tpu.memory_space<vmem>>, vector<1x8x256xf32>
    %26 = vector.shape_cast %25 : vector<1x8x256xf32> to vector<8x256xf32>
    %27 = vector.shape_cast %24 : vector<8x256xf32> to vector<1x8x256xf32>
    tpu.vector_store %arg3[%c0_11, %c0_12, %c0_13], %27 {strides = array<i32>} : memref<1x8x256xf32, #tpu.memory_space<vmem>>, vector<1x8x256xf32>,
    return
  }
  func.func @transform_0(%arg0: i32) -> (i32, i32, i32) {
    %c0_i32 = arith.constant 0 : i32
    %c0_i32_0 = arith.constant 0 : i32
    %c0_i32_1 = arith.constant 0 : i32
    return %arg0, %c0_i32, %c0_i32_0 : i32, i32, i32
  }
  func.func @transform_1(%arg0: i32) -> (i32, i32) {
    %c0_i32 = arith.constant 0 : i32
    %c0_i32_0 = arith.constant 0 : i32
    %c0_i32_1 = arith.constant 0 : i32
    return %c0_i32, %c0_i32_0 : i32, i32
  }
  func.func @transform_2(%arg0: i32) -> (i32, i32, i32) {
    %c0_i32 = arith.constant 0 : i32
    %c0_i32_0 = arith.constant 0 : i32
    %c0_i32_1 = arith.constant 0 : i32
    return %arg0, %c0_i32, %c0_i32_0 : i32, i32, i32
  }
}

</mosaic_0001>

<llo_original>
// kernel: tpu_custom_call.1
$region0: #{tpu_custom_call.1}
  #allocation0 [shape = 'u32[]', space=smem, size = 0x4, offset = 0x4, fixed_abs, tag = 'smem constant byte address 0x4 - core index']
  #allocation1 [shape = 'u32[144,128]{1,0:T(1,128)}', space=vmem, size = 0x12000, scoped, tag = 'internal scratch']
  %s0 = inlined_call_operand.hbm [shape: bf16[2,64,256], index: 0, kind: input, shape index: {}]
  %s1 = inlined_call_operand.hbm [shape: bf16[8,64], index: 1, kind: input, shape index: {}]
  %s2 = inlined_call_operand.hbm [shape: f32[2,8,256], index: 2, kind: output, shape index: {}]
  %s3 = sld [smem:[#allocation0]]
  $region49: #{tpu_custom_call.1} parent=0
    _
  %s5 = ssub.s32 1, %s3
  %s6 = scalar_select 0, %s5, %s3
  $region1: #{tpu_custom_call.1} parent=0
    #allocation2 [shape = 'u8[65536]{0}', space=vmem, size = 0x10000, scoped, tag = 'input window, operand 0']
    #allocation3 [shape = 's32[2]{0}', space=sflag, size = 0x8, scoped, tag = 'scoped memory for tpu_custom_call.1']
    #allocation4 [shape = 's32[2]{0}', space=sflag, size = 0x8, scoped, tag = 'scoped memory for tpu_custom_call.1']
    #allocation5 [shape = 'u8[2048]{0}', space=vmem, size = 0x800, scoped, tag = 'input window, operand 1, single buffered']
    #allocation6 [shape = 's32[1]{0}', space=sflag, size = 0x4, scoped, tag = 'scoped memory for tpu_custom_call.1']
    #allocation7 [shape = 'u8[16384]{0}', space=vmem, size = 0x4000, scoped, tag = 'output window, operand 0']
    %7 = vsyncpa [#allocation3], 0
    %s8 = scalar_lea.sflag [#allocation3], 1
    %9 = vsyncpa %s8, 0
    %10 = vsyncpa [#allocation6], 0
    %11 = vsyncpa [#allocation4], 0
    %s12 = scalar_lea.sflag [#allocation4], 1
    %13 = vsyncpa %s12, 0
    loop: start=0, step=1, limit=4
    $region2: #{tpu_custom_call.1} parent=1 // loop_pre_header
      _
    $region3: #{tpu_custom_call.1} parent=1 // loop_header
      %s15 = sphi 0, %s19
      %p16 = scmp.ge.s32.totalorder %s15, 4
      %s25 = sphi 0, %s27
      %s28 = sphi 0, %s25
      %s29 = sphi 0, %s28
      %s45 = sphi 0, %s29
      %s49 = sphi 0, %s49
      %s51 = sphi 0, %s49
      %s52 = sphi 0, %s51
      %s66 = sphi 0, %s52
      %s72 = sphi 0, %s74
      %s75 = sphi 0, %s72
      %s76 = sphi 0, %s75
      %s92 = sphi 0, %s76
    $region4: #{tpu_custom_call.1} parent=1 // loop_header_branch
      %18 = sbr.rel (%p16) target = $region8
    $region5: #{tpu_custom_call.1} parent=1 // loop_body
      %s20 = ssub.s32 %s15, 1
      %s21 = ssub.s32 %s15, 2
      %s22 = sadd.s32 %s15, 1
      %s23 = ssub.s32 %s15, %s22
      %p24 = scmp.eq.s32.totalorder %s23, 0
      %s26 = sadd.s32 %s25, 1
      %s27 = scalar_select %p24, %s25, %s26
      %p30 = pneg %p24
      %p31 = scmp.eq.s32.totalorder %s15, 1
      %p32 = por %p30, %p31
      %p33 = scmp.ne.s32.totalorder %s25, %s28
      %p34 = scmp.eq.s32.totalorder %s15, 0
      %p35 = por %p33, %p34
      %p36 = scmp.ne.s32.totalorder %s25, %s28
      %p37 = scmp.eq.s32.totalorder %s20, 1
      %p38 = por %p36, %p37
      %p39 = scmp.ne.s32.totalorder %s28, %s29
      %p40 = scmp.eq.s32.totalorder %s20, 0
      %p41 = por %p39, %p40
      %p42 = scmp.ne.s32.totalorder %s28, %s29
      %p43 = scmp.eq.s32.totalorder %s21, 1
      %p44 = por %p42, %p43
      %p46 = scmp.ne.s32.totalorder %s29, %s45
      %p47 = scmp.eq.s32.totalorder %s21, 0
      %p48 = por %p46, %p47
      %s50 = sadd.s32 %s49, 1
      %p53 = scmp.eq.s32.totalorder %s15, 1
      %p54 = scmp.ne.s32.totalorder %s49, %s51
      %p55 = scmp.eq.s32.totalorder %s15, 0
      %p56 = por %p54, %p55
      %p57 = scmp.ne.s32.totalorder %s49, %s51
      %p58 = scmp.eq.s32.totalorder %s20, 1
      %p59 = por %p57, %p58
      %p60 = scmp.ne.s32.totalorder %s51, %s52
      %p61 = scmp.eq.s32.totalorder %s20, 0
      %p62 = por %p60, %p61
      %p63 = scmp.ne.s32.totalorder %s51, %s52
      %p64 = scmp.eq.s32.totalorder %s21, 1
      %p65 = por %p63, %p64
      %p67 = scmp.ne.s32.totalorder %s52, %s66
      %p68 = scmp.eq.s32.totalorder %s21, 0
      %p69 = por %p67, %p68
      %s70 = ssub.s32 %s15, %s22
      %p71 = scmp.eq.s32.totalorder %s70, 0
      %s73 = sadd.s32 %s72, 1
      %s74 = scalar_select %p71, %s72, %s73
      %p77 = pneg %p71
      %p78 = scmp.eq.s32.totalorder %s15, 1
      %p79 = por %p77, %p78
      %p80 = scmp.ne.s32.totalorder %s72, %s75
      %p81 = scmp.eq.s32.totalorder %s15, 0
      %p82 = por %p80, %p81
      %p83 = scmp.ne.s32.totalorder %s72, %s75
      %p84 = scmp.eq.s32.totalorder %s20, 1
      %p85 = por %p83, %p84
      %p86 = scmp.ne.s32.totalorder %s75, %s76
      %p87 = scmp.eq.s32.totalorder %s20, 0
      %p88 = por %p86, %p87
      %p89 = scmp.ne.s32.totalorder %s75, %s76
      %p90 = scmp.eq.s32.totalorder %s21, 1
      %p91 = por %p89, %p90
      %p93 = scmp.ne.s32.totalorder %s76, %s92
      %p94 = scmp.eq.s32.totalorder %s21, 0
      %p95 = por %p93, %p94
      %p96 = scmp.le.s32.totalorder 1, %s15
      %p97 = scmp.lt.s32.totalorder %s15, 3
      %p98 = pnand %p96, %p97
      %p99 = pneg %p98
      // Predicated region
      $region9: #{tpu_custom_call.1} parent=5 // pred_check
        _
      $region10: #{tpu_custom_call.1} parent=5 // pred_check_branch
        %101 = sbr.rel (%p98) target = $region12
      $region11: #{tpu_custom_call.1} parent=5 // pred_region
        %s102 = ssub.s32 %s15, 1
        // Predicated region
        $region13: #{tpu_custom_call.1} parent=11 // pred_check
          %p103 = pneg %p62
        $region14: #{tpu_custom_call.1} parent=11 // pred_check_branch
          %105 = sbr.rel (%p103) target = $region16
        $region15: #{tpu_custom_call.1} parent=11 // pred_region
          %s107 = ssub.s32 64, 64
          %108 = vsyncadd [#allocation6], %s107
          %s110 = sshll.u32 [#allocation5], 4
          %s111 = int_to_ptr.vmem [resolvable:$true] %s110
          %113 = dma.hbm_to_vmem [thread:$0]  %s1, 64, %s111, [#allocation6]
        $region16: #{tpu_custom_call.1} parent=11 // pred_fallthru
          _
      $region12: #{tpu_custom_call.1} parent=5 // pred_fallthru
        _
      %p114 = scmp.lt.s32.totalorder %s15, 2
      // Predicated region
      $region17: #{tpu_custom_call.1} parent=5 // pred_check
        %p115 = pneg %p114
      $region18: #{tpu_custom_call.1} parent=5 // pred_check_branch
        %117 = sbr.rel (%p115) target = $region20
      $region19: #{tpu_custom_call.1} parent=5 // pred_region
        // Predicated region
        $region21: #{tpu_custom_call.1} parent=19 // pred_check
          %p118 = pneg %p35
        $region22: #{tpu_custom_call.1} parent=19 // pred_check_branch
          %120 = sbr.rel (%p118) target = $region24
        $region23: #{tpu_custom_call.1} parent=19 // pred_region
          %s121 = sand.u32 %s25, 1
          %s122 = scalar_lea.sflag [#allocation3], %s121
          %s123 = sand.u32 %s25, 1
          %s124 = smul.addr %s123, 64
          %s125 = scalar_lea.vmem [#allocation2], %s124
          %s127 = ssub.s32 1024, 1024
          %128 = vsyncadd %s122, %s127
          %s129 = smul.addr %s15, 16
          %s130 = smul.addr %s129, 64
          %s131 = scalar_lea.hbm %s0, %s130
          %s132 = sshll.u32 %s125, 4
          %s133 = int_to_ptr.vmem [resolvable:$true] %s132
          %138 = dma.hbm_to_vmem [thread:$0]  %s131, 1024, %s133, %s122, 128, 128, 8
        $region24: #{tpu_custom_call.1} parent=19 // pred_fallthru
          _
      $region20: #{tpu_custom_call.1} parent=5 // pred_fallthru
        _
      %p139 = scmp.le.s32.totalorder 1, %s15
      %p140 = scmp.lt.s32.totalorder %s15, 3
      %p141 = pnand %p139, %p140
      %p142 = pneg %p141
      // Predicated region
      $region25: #{tpu_custom_call.1} parent=5 // pred_check
        _
      $region26: #{tpu_custom_call.1} parent=5 // pred_check_branch
        %144 = sbr.rel (%p141) target = $region28
      $region27: #{tpu_custom_call.1} parent=5 // pred_region
        %s145 = ssub.s32 %s15, 1
        %s146 = sand.u32 %s28, 1
        %s147 = scalar_lea.sflag [#allocation3], %s146
        %s148 = sand.u32 %s28, 1
        %s149 = smul.addr %s148, 64
        %s150 = scalar_lea.vmem [#allocation2], %s149
        // Predicated region
        $region29: #{tpu_custom_call.1} parent=27 // pred_check
          %p151 = pneg %p41
        $region30: #{tpu_custom_call.1} parent=27 // pred_check_branch
          %153 = sbr.rel (%p151) target = $region32
        $region31: #{tpu_custom_call.1} parent=27 // pred_region
          %154 = dma.done %s147, 1024
        $region32: #{tpu_custom_call.1} parent=27 // pred_fallthru
          _
        // Predicated region
        $region33: #{tpu_custom_call.1} parent=27 // pred_check
          %p155 = pneg %p62
        $region34: #{tpu_custom_call.1} parent=27 // pred_check_branch
          %157 = sbr.rel (%p155) target = $region36
        $region35: #{tpu_custom_call.1} parent=27 // pred_region
          %158 = dma.done [#allocation6], 64
        $region36: #{tpu_custom_call.1} parent=27 // pred_fallthru
          _
        %s159 = sand.u32 %s28, 1
        %s160 = scalar_lea.sflag [#allocation3], %s159
        %s161 = sand.u32 %s28, 1
        %s162 = smul.addr %s161, 64
        %s163 = scalar_lea.vmem [#allocation2], %s162
        %p164 = pneg %p41
        %p165 = pneg %p38
        %p166 = pneg %p62
        %p167 = pneg %p59
        %p168 = pneg %p88
        %p169 = pneg %p85
        %s170 = sand.u32 %s75, 1
        %s171 = scalar_lea.sflag [#allocation4], %s170
        %s172 = sand.u32 %s75, 1
        %s173 = smul.addr %s172, 16
        %s174 = scalar_lea.vmem [#allocation7], %s173
        %v176 = vld [vmem:[#allocation5] sm:$0xf]
        %v177 = vld [vmem:[%s150] sm:$0xff]
        %v178 = vld [vmem:[%s150 + $0x8] sm:$0xff]
        %v179 = vld [vmem:[%s150 + $0x10] sm:$0xff]
        %v180 = vld [vmem:[%s150 + $0x18] sm:$0xff]
        %v181 = vld [vmem:[%s150 + $0x20] sm:$0xff]
        %v182 = vld [vmem:[%s150 + $0x28] sm:$0xff]
        %v183 = vld [vmem:[%s150 + $0x30] sm:$0xff]
        %v184 = vld [vmem:[%s150 + $0x38] sm:$0xff]
        %v193 = vunpack.c.l.b16 %v177
        %v194 = vunpack.c.h.b16 %v177
        %v195 = vunpack.c.l.b16 %v178
        %v196 = vunpack.c.h.b16 %v178
        %v197 = vunpack.c.l.b16 %v179
        %v198 = vunpack.c.h.b16 %v179
        %v199 = vunpack.c.l.b16 %v180
        %v200 = vunpack.c.h.b16 %v180
        %v201 = vunpack.c.l.b16 %v181
        %v202 = vunpack.c.h.b16 %v181
        %v203 = vunpack.c.l.b16 %v182
        %v204 = vunpack.c.h.b16 %v182
        %v205 = vunpack.c.l.b16 %v183
        %v206 = vunpack.c.h.b16 %v183
        %v207 = vunpack.c.l.b16 %v184
        %v208 = vunpack.c.h.b16 %v184
        %v209 = vpack.c.b16 %v195, %v193
        %v210 = vpack.c.b16 %v196, %v194
        %v211 = vpack.c.b16 %v199, %v197
        %v212 = vpack.c.b16 %v200, %v198
        %v213 = vpack.c.b16 %v203, %v201
        %v214 = vpack.c.b16 %v204, %v202
        %v215 = vpack.c.b16 %v207, %v205
        %v216 = vpack.c.b16 %v208, %v206
        %vm225 = vcmask 523264
        %v227 = vsel %vm225, %v176, 0
        %229 = vmatprep.subr.bf16.mxu0 0
        %230 = vmatpush1.bf16.msra.mxu0 0
        %231 = vmatprep.subr.bf16.mxu0 0
        %232 = vmatpush1.bf16.msra.mxu0 0
        %233 = vmatprep.subr.bf16.mxu0 0
        %234 = vmatpush1.bf16.msra.mxu0 0
        %235 = vmatprep.subr.bf16.mxu0 0
        %236 = vmatpush1.bf16.msra.mxu0 0
        %237 = vmatprep.subr.bf16.mxu0 %v216
        %238 = vmatpush1.bf16.msra.mxu0 %v215
        %239 = vmatprep.subr.bf16.mxu0 %v214
        %240 = vmatpush1.bf16.msra.mxu0 %v213
        %241 = vmatprep.subr.bf16.mxu0 %v212
        %242 = vmatpush1.bf16.msra.mxu0 %v211
        %243 = vmatprep.subr.bf16.mxu0 %v210
        %244 = vmatpush1.bf16.msra.mxu0 %v209
        %245 = vmatprep.subr.bf16.mxu0 0
        %246 = vmatpush2.bf16.msra.mxu0 0
        %247 = vmatprep.subr.bf16.mxu0 0
        %248 = vmatpush2.bf16.msra.mxu0 0
        %249 = vmatprep.subr.bf16.mxu0 0
        %250 = vmatpush2.bf16.msra.mxu0 0
        %251 = vmatprep.subr.bf16.mxu0 0
        %252 = vmatpush2.bf16.msra.mxu0 0
        %253 = vmatprep.subr.bf16.mxu0 0
        %254 = vmatpush2.bf16.msra.mxu0 0
        %255 = vmatprep.subr.bf16.mxu0 0
        %256 = vmatpush2.bf16.msra.mxu0 0
        %257 = vmatprep.subr.bf16.mxu0 0
        %258 = vmatpush2.bf16.msra.mxu0 0
        %259 = vmatprep.subr.bf16.mxu0 0
        %260 = vmatpush2.bf16.msra.mxu0 0
        %261 = vmatprep.mubr.bf16.mxu0 0
        %262 = vmatmul.mubr.bf16.gmra.mxu0 %v227
        %v263 = vpop.f32.mrf.mxu0
        %v264 = vadd.f32 0.0, %v263
        %v265 = vpop.f32.mrf.mxu0
        %v266 = vadd.f32 0.0, %v265
        %v267 = vpop.f32.mrf.mxu0
        %v268 = vpop.f32.mrf.mxu0
        %269 = vdwg.mxu0
        %v270 = vadd.f32 %v264, %v266
        %271 = vadd.xlane.f32.xlu0 %v270
        %v272 = vpop.xlane.xlu0 %271
        %v273 = vrcp.pop 256.0
        %v274 = vmul.f32 %v272, %v273
        %v275 = vsub.f32 %v264, %v274
        %v276 = vsub.f32 %v266, %v274
        %v277 = vmul.f32 %v275, %v275
        %v278 = vmul.f32 %v276, %v276
        %v279 = vadd.f32 %v277, %v278
        %280 = vadd.xlane.f32.xlu0 %v279
        %v281 = vpop.xlane.xlu0 %280
        %v282 = vmul.f32 %v281, %v273
        %v283 = vadd.f32 %v282, 1e-05
        %v284 = vrsqrt.pop %v283
        %v285 = vmul.f32 %v275, %v284
        %v286 = vmul.f32 %v276, %v284
        %vm287 = vcmp.ge.f32.partialorder %v285, 0.0
        %vm288 = vcmp.ge.f32.partialorder %v286, 0.0
        %v289 = vmul.f32 %v285, 0.2
        %v290 = vmul.f32 %v286, 0.2
        %v291 = vsel %vm287, %v285, %v289
        %v292 = vsel %vm288, %v286, %v290
        %293 = vst [vmem:[%s174] sm:$0xff] %v291
        %294 = vst [vmem:[%s174 + $0x8] sm:$0xff] %v292
        %s295 = sand.u32 %s75, 1
        %s296 = scalar_lea.sflag [#allocation4], %s295
        %s297 = sand.u32 %s75, 1
        %s298 = smul.addr %s297, 16
        %s299 = scalar_lea.vmem [#allocation7], %s298
        // Predicated region
        $region37: #{tpu_custom_call.1} parent=27 // pred_check
          %p300 = pneg %p85
        $region38: #{tpu_custom_call.1} parent=27 // pred_check_branch
          %302 = sbr.rel (%p300) target = $region40
        $region39: #{tpu_custom_call.1} parent=27 // pred_region
          %s304 = ssub.s32 256, 256
          %305 = vsyncadd %s296, %s304
          %s306 = smul.addr %s20, 2
          %s307 = smul.addr %s306, 128
          %s308 = scalar_lea.hbm %s2, %s307
          %s310 = sshll.u32 %s299, 4
          %s311 = int_to_ptr.vmem [resolvable:$true] %s310
          %313 = dma.vmem_to_hbm [thread:$0]  %s311, 256, %s308, %s296
        $region40: #{tpu_custom_call.1} parent=27 // pred_fallthru
          _
      $region28: #{tpu_custom_call.1} parent=5 // pred_fallthru
        _
      %p314 = scmp.le.s32.totalorder 2, %s15
      // Predicated region
      $region41: #{tpu_custom_call.1} parent=5 // pred_check
        %p315 = pneg %p314
      $region42: #{tpu_custom_call.1} parent=5 // pred_check_branch
        %317 = sbr.rel (%p315) target = $region44
      $region43: #{tpu_custom_call.1} parent=5 // pred_region
        %s318 = ssub.s32 %s15, 2
        // Predicated region
        $region45: #{tpu_custom_call.1} parent=43 // pred_check
          %p319 = pneg %p91
        $region46: #{tpu_custom_call.1} parent=43 // pred_check_branch
          %321 = sbr.rel (%p319) target = $region48
        $region47: #{tpu_custom_call.1} parent=43 // pred_region
          %s322 = sand.u32 %s76, 1
          %s323 = scalar_lea.sflag [#allocation4], %s322
          %s324 = sand.u32 %s76, 1
          %s325 = smul.addr %s324, 16
          %s326 = scalar_lea.vmem [#allocation7], %s325
          %327 = dma.done %s323, 256
        $region48: #{tpu_custom_call.1} parent=43 // pred_fallthru
          _
      $region44: #{tpu_custom_call.1} parent=5 // pred_fallthru
        _
    $region6: #{tpu_custom_call.1} parent=1 // loop_footer
      %s19 = sadd.s32 1, %s15
    $region7: #{tpu_custom_call.1} parent=1 // loop_footer_branch
      %14 = sbr.rel target = $region3
    $region8: #{tpu_custom_call.1} parent=1 // loop_exit
      _
    %328 = vsyncpa [#allocation3], 1
    %s329 = scalar_lea.sflag [#allocation3], 1
    %330 = vsyncpa %s329, 1
    %331 = vsyncpa [#allocation6], 1
    %332 = vsyncpa [#allocation4], 1
    %s333 = scalar_lea.sflag [#allocation4], 1
    %334 = vsyncpa %s333, 1

</llo_original>
